<compile_context>
chip_gen: v6e
topology: v6e:2x2x1
jax: 0.10.0
libtpu: 0.0.40
codegen_flags: <defaults>
</compile_context>

<pallas_src>
import math

import jax
import jax.numpy as jnp
from jax.experimental import pallas as pl
from jax.experimental.pallas import tpu as pltpu

FEATURES = 32
N_LAYERS = 4
BATCH = 8

PACK = 4                     # samples packed per row: 4 * 32 features = 128 lanes
LANES = PACK * FEATURES      # 128 (fully lane-dense on every generation)


def mapping_kernel(z_ref, ones_ref, w_ref, b_ref, out_ref):
    # z_ref:    (tm, 128)        packed activations (4 samples per row)
    # ones_ref: (128, 128)       block-diagonal ones (segmented-sum operator)
    # w_ref:    (L, 128, 128)    block-diagonal, pre-scaled by 1/sqrt(F)
    # b_ref:    (L, 1, 128)      bias tiled across the 4 sample groups
    # out_ref:  (tm, 128)
    z = z_ref[...]

    # F.normalize(z, dim=1): per-sample (per 32-lane group) L2 normalization.
    # Segmented sum of squares via one MXU matmul with the block-diag ones
    # matrix; z / max(||z||, 1e-12) == z * rsqrt(max(sum(z*z), 1e-24)), and
    # rsqrt lowers to the EUP slot (off the VPU critical path).
    sumsq = jnp.dot(z * z, ones_ref[...], preferred_element_type=jnp.float32)
    x = z * jax.lax.rsqrt(jnp.maximum(sumsq, 1e-24))

    n_layers = w_ref.shape[0]
    # Static unroll (4 iterations, static slices) -> max LLO visibility.
    for i in range(n_layers):
        x = jnp.dot(x, w_ref[i], preferred_element_type=jnp.float32) + b_ref[i]
        if i < n_layers - 1:
            # LeakyReLU(0.2): single max instead of compare+select.
            x = jnp.maximum(x, 0.2 * x)
        else:
            # Final activation is ReLU (layers[-1] = nn.ReLU()).
            x = jnp.maximum(x, 0.0)

    out_ref[...] = x


def _pick_row_tile(rows: int) -> int:
    """Batch tile in packed rows (PACK samples per row)."""
    if rows <= 8:
        return 8
    # Big tiles amortize the ~0.35us/grid-step overhead; cap so the grid keeps
    # >=2 steps (lets v7x's 2 TensorCores both take work) and so double-buffered
    # in+out tiles stay comfortably under v5e's 16 MiB default scoped VMEM.
    cap = min(2048, max(8, (rows // 2) // 8 * 8))
    # Prefer a large divisor of `rows` -> no tail-pad copy at all.
    for cand in (2048, 1024, 512, 256):
        if cand <= cap and rows % cand == 0:
            return cand
    # Otherwise take the biggest allowed tile and pad only the tail.
    for cand in (2048, 1024, 512, 256, 128, 64, 32, 16, 8):
        if cand <= cap:
            return cand
    return 8


def mapping_network(z, weights, biases):
    """z: (B, F) f32; weights: (L, F, F) (x @ W layout); biases: (L, 1, F)."""
    B, F = z.shape
    L = weights.shape[0]
    assert F == FEATURES and LANES == PACK * F

    # ---- Host-side constant prep (weights are call-invariant parameters; in a
    # real model these would be built once and cached). ----------------------
    w_scaled = (weights * (1.0 / math.sqrt(F))).astype(jnp.float32)
    # Block-diagonal (128x128) weights: PACK copies of W on the diagonal, so a
    # packed row applies the same 32x32 linear independently to each sample.
    eye_p = jnp.eye(PACK, dtype=jnp.float32)
    w_blk = jnp.einsum("pq,lij->lpiqj", eye_p, w_scaled).reshape(L, LANES, LANES)
    # Bias tiled across the PACK sample groups -> (L, 1, 128).
    b_blk = jnp.tile(biases.reshape(L, 1, F).astype(jnp.float32), (1, 1, PACK))
    # Block-diagonal ones matrix: segmented (per-32-lane-group) sum operator.
    ones_blk = jnp.kron(eye_p, jnp.ones((F, F), jnp.float32))

    # ---- Pack and (tail-only) pad the activations. --------------------------
    rows = pl.cdiv(B, PACK)
    tm = _pick_row_tile(rows)
    rows_pad = pl.cdiv(rows, tm) * tm
    b_pad = rows_pad * PACK
    if b_pad != B:
        # Tail-only zero pad; padded samples normalize to 0 via the 1e-24 clamp
        # and are sliced off below.
        z = jnp.pad(z.astype(jnp.float32), ((0, b_pad - B), (0, 0)))
    else:
        z = z.astype(jnp.float32)
    zp = z.reshape(rows_pad, LANES)   # free contiguous reshape in HBM

    grid = (rows_pad // tm,)

    out = pl.pallas_call(
        mapping_kernel,
        out_shape=jax.ShapeDtypeStruct((rows_pad, LANES), jnp.float32),
        grid=grid,
        in_specs=[
            # Batch-tiled, lane-dense activations.
            pl.BlockSpec((tm, LANES), lambda i: (i, 0)),
            # Grid-invariant (VMEM-resident) constants: ~64 KB + ~256 KB + tiny.
            pl.BlockSpec((LANES, LANES), lambda i: (0, 0)),
            pl.BlockSpec((L, LANES, LANES), lambda i: (0, 0, 0)),
            pl.BlockSpec((L, 1, LANES), lambda i: (0, 0, 0)),
        ],
        out_specs=pl.BlockSpec((tm, LANES), lambda i: (i, 0)),
        compiler_params=pltpu.CompilerParams(
            # Independent batch tiles: lets v7x's 2 TensorCores split the grid;
            # harmless no-op on v5e/v6e.
            dimension_semantics=("parallel",),
        ),
    )(zp, ones_blk, w_blk, b_blk)

    return out.reshape(b_pad, F)[:B]


def reference(z, weights, biases):
    # Pure-JAX reference mirroring the PyTorch module exactly.
    norm = jnp.sqrt(jnp.sum(z * z, axis=1, keepdims=True))
    x = z / jnp.maximum(norm, 1e-12)
    c = 1.0 / math.sqrt(FEATURES)
    for i in range(N_LAYERS):
        x = x @ weights[i] * c + biases[i]
        if i < N_LAYERS - 1:
            x = jnp.where(x > 0, x, 0.2 * x)
        else:
            x = jnp.maximum(x, 0.0)
    return x


if __name__ == "__main__":
    key = jax.random.PRNGKey(0)
    k_z, k_w = jax.random.split(key)

    # Deterministic parameter init (EqualisedLinear: weight ~ N(0,1), bias = 0).
    # weights stored as (F_in, F_out): W_jax[i] = W_torch[i].T so x @ W matches
    # F.linear(x, W_torch).
    weights = jax.random.normal(k_w, (N_LAYERS, FEATURES, FEATURES), dtype=jnp.float32)
    biases = jnp.zeros((N_LAYERS, 1, FEATURES), dtype=jnp.float32)

    z = jax.random.normal(k_z, (BATCH, FEATURES), dtype=jnp.float32)

    out = mapping_network(z, weights, biases)
    jax.block_until_ready(out)

    ref = reference(z, weights, biases)
    assert out.shape == (BATCH, FEATURES)
    # rsqrt + folded weight scale + MXU segmented-sum shift rounding order
    # slightly vs. the exact sqrt/div reference -> rtol loosened to 1e-4.
    assert jnp.allclose(out, ref, atol=1e-5, rtol=1e-4), "mismatch vs reference"

    # TODO(synk): get_two_w / get_single_w / _get_style_vector involve host-side
    # RNG branching (style mixing) and trivial lerps/expands; only forward() is
    # the hot path and is implemented here.
    print("KERNEL_OK")
</pallas_src>

<mosaic_0001>
module attributes {stable_mosaic.version = 11 : i64} {
  func.func @mapping_kernel(%arg0: i32, %arg1: memref<8x128xf32, #tpu.memory_space<vmem>>, %arg2: memref<128x128xf32, #tpu.memory_space<vmem>>, %arg3: memref<4x128x128xf32, #tpu.memory_space<vmem>>, %arg4: memref<4x1x128xf32, #tpu.memory_space<vmem>>, %arg5: memref<8x128xf32, #tpu.memory_space<vmem>>) attributes {dimension_semantics = [#tpu.dimension_semantics<parallel>], iteration_bounds = array<i64: 1>, scalar_prefetch = 0 : i64, scratch_operands = 0 : i64, tpu.core_type = #tpu.core_type<tc>, window_params = [{transform_indices = @transform_0, window_bounds = array<i64: 8, 128>}, {pipeline_mode = #tpu.pipeline_mode<synchronous>, transform_indices = @transform_1, window_bounds = array<i64: 128, 128>}, {pipeline_mode = #tpu.pipeline_mode<synchronous>, transform_indices = @transform_2, window_bounds = array<i64: 4, 128, 128>}, {pipeline_mode = #tpu.pipeline_mode<synchronous>, transform_indices = @transform_3, window_bounds = array<i64: 4, 1, 128>}, {transform_indices = @transform_4, window_bounds = array<i64: 8, 128>}]} {
    %c0 = arith.constant 0 : index
    %c0_0 = arith.constant 0 : index
    %0 = vector.load %arg1[%c0, %c0_0] : memref<8x128xf32, #tpu.memory_space<vmem>>, vector<8x128xf32>
    %1 = arith.mulf %0, %0 : vector<8x128xf32>
    %c0_1 = arith.constant 0 : index
    %c0_2 = arith.constant 0 : index
    %2 = vector.load %arg2[%c0_1, %c0_2] : memref<128x128xf32, #tpu.memory_space<vmem>>, vector<128x128xf32>
    %cst = arith.constant dense<0.000000e+00> : vector<8x128xf32>
    %3 = tpu.matmul %1, %2, %cst {dimension_numbers = #tpu.dot_dimension_numbers<[1], [0], [0], [1], [0, 0, 1, 1], [], []>} : vector<8x128xf32>, vector<128x128xf32>, vector<8x128xf32> -> vector<8x128xf32>
    %cst_3 = arith.constant 1.000000e-24 : f32
    %4 = vector.broadcast %cst_3 : f32 to vector<8x128xf32>
    %5 = arith.maximumf %3, %4 : vector<8x128xf32>
    %6 = math.rsqrt %5 : vector<8x128xf32>
    %7 = arith.mulf %0, %6 : vector<8x128xf32>
    %c0_4 = arith.constant 0 : index
    %c0_5 = arith.constant 0 : index
    %c0_6 = arith.constant 0 : index
    %8 = vector.load %arg3[%c0_4, %c0_5, %c0_6] : memref<4x128x128xf32, #tpu.memory_space<vmem>>, vector<1x128x128xf32>
    %9 = vector.shape_cast %8 : vector<1x128x128xf32> to vector<128x128xf32>
    %cst_7 = arith.constant dense<0.000000e+00> : vector<8x128xf32>
    %10 = tpu.matmul %7, %9, %cst_7 {dimension_numbers = #tpu.dot_dimension_numbers<[1], [0], [0], [1], [0, 0, 1, 1], [], []>} : vector<8x128xf32>, vector<128x128xf32>, vector<8x128xf32> -> vector<8x128xf32>
    %c0_8 = arith.constant 0 : index
    %c0_9 = arith.constant 0 : index
    %c0_10 = arith.constant 0 : index
    %11 = vector.load %arg4[%c0_8, %c0_9, %c0_10] : memref<4x1x128xf32, #tpu.memory_space<vmem>>, vector<1x1x128xf32>
    %12 = vector.shape_cast %11 : vector<1x1x128xf32> to vector<1x128xf32>
    %13 = vector.broadcast %12 : vector<1x128xf32> to vector<8x128xf32>
    %14 = arith.addf %10, %13 : vector<8x128xf32>
    %cst_11 = arith.constant 2.000000e-01 : f32
    %15 = vector.broadcast %cst_11 : f32 to vector<8x128xf32>
    %16 = arith.mulf %15, %14 : vector<8x128xf32>
    %17 = arith.maximumf %14, %16 : vector<8x128xf32>
    %c1 = arith.constant 1 : index
    %c0_12 = arith.constant 0 : index
    %c0_13 = arith.constant 0 : index
    %18 = vector.load %arg3[%c1, %c0_12, %c0_13] : memref<4x128x128xf32, #tpu.memory_space<vmem>>, vector<1x128x128xf32>
    %19 = vector.shape_cast %18 : vector<1x128x128xf32> to vector<128x128xf32>
    %cst_14 = arith.constant dense<0.000000e+00> : vector<8x128xf32>
    %20 = tpu.matmul %17, %19, %cst_14 {dimension_numbers = #tpu.dot_dimension_numbers<[1], [0], [0], [1], [0, 0, 1, 1], [], []>} : vector<8x128xf32>, vector<128x128xf32>, vector<8x128xf32> -> vector<8x128xf32>
    %c1_15 = arith.constant 1 : index
    %c0_16 = arith.constant 0 : index
    %c0_17 = arith.constant 0 : index
    %21 = vector.load %arg4[%c1_15, %c0_16, %c0_17] : memref<4x1x128xf32, #tpu.memory_space<vmem>>, vector<1x1x128xf32>
    %22 = vector.shape_cast %21 : vector<1x1x128xf32> to vector<1x128xf32>
    %23 = vector.broadcast %22 : vector<1x128xf32> to vector<8x128xf32>
    %24 = arith.addf %20, %23 : vector<8x128xf32>
    %cst_18 = arith.constant 2.000000e-01 : f32
    %25 = vector.broadcast %cst_18 : f32 to vector<8x128xf32>
    %26 = arith.mulf %25, %24 : vector<8x128xf32>
    %27 = arith.maximumf %24, %26 : vector<8x128xf32>
    %c2 = arith.constant 2 : index
    %c0_19 = arith.constant 0 : index
    %c0_20 = arith.constant 0 : index
    %28 = vector.load %arg3[%c2, %c0_19, %c0_20] : memref<4x128x128xf32, #tpu.memory_space<vmem>>, vector<1x128x128xf32>
    %29 = vector.shape_cast %28 : vector<1x128x128xf32> to vector<128x128xf32>
    %cst_21 = arith.constant dense<0.000000e+00> : vector<8x128xf32>
    %30 = tpu.matmul %27, %29, %cst_21 {dimension_numbers = #tpu.dot_dimension_numbers<[1], [0], [0], [1], [0, 0, 1, 1], [], []>} : vector<8x128xf32>, vector<128x128xf32>, vector<8x128xf32> -> vector<8x128xf32>
    %c2_22 = arith.constant 2 : index
    %c0_23 = arith.constant 0 : index
    %c0_24 = arith.constant 0 : index
    %31 = vector.load %arg4[%c2_22, %c0_23, %c0_24] : memref<4x1x128xf32, #tpu.memory_space<vmem>>, vector<1x1x128xf32>
    %32 = vector.shape_cast %31 : vector<1x1x128xf32> to vector<1x128xf32>
    %33 = vector.broadcast %32 : vector<1x128xf32> to vector<8x128xf32>
    %34 = arith.addf %30, %33 : vector<8x128xf32>
    %cst_25 = arith.constant 2.000000e-01 : f32
    %35 = vector.broadcast %cst_25 : f32 to vector<8x128xf32>
    %36 = arith.mulf %35, %34 : vector<8x128xf32>
    %37 = arith.maximumf %34, %36 : vector<8x128xf32>
    %c3 = arith.constant 3 : index
    %c0_26 = arith.constant 0 : index
    %c0_27 = arith.constant 0 : index
    %38 = vector.load %arg3[%c3, %c0_26, %c0_27] : memref<4x128x128xf32, #tpu.memory_space<vmem>>, vector<1x128x128xf32>
    %39 = vector.shape_cast %38 : vector<1x128x128xf32> to vector<128x128xf32>
    %cst_28 = arith.constant dense<0.000000e+00> : vector<8x128xf32>
    %40 = tpu.matmul %37, %39, %cst_28 {dimension_numbers = #tpu.dot_dimension_numbers<[1], [0], [0], [1], [0, 0, 1, 1], [], []>} : vector<8x128xf32>, vector<128x128xf32>, vector<8x128xf32> -> vector<8x128xf32>
    %c3_29 = arith.constant 3 : index
    %c0_30 = arith.constant 0 : index
    %c0_31 = arith.constant 0 : index
    %41 = vector.load %arg4[%c3_29, %c0_30, %c0_31] : memref<4x1x128xf32, #tpu.memory_space<vmem>>, vector<1x1x128xf32>
    %42 = vector.shape_cast %41 : vector<1x1x128xf32> to vector<1x128xf32>
    %43 = vector.broadcast %42 : vector<1x128xf32> to vector<8x128xf32>
    %44 = arith.addf %40, %43 : vector<8x128xf32>
    %cst_32 = arith.constant 0.000000e+00 : f32
    %45 = vector.broadcast %cst_32 : f32 to vector<8x128xf32>
    %46 = arith.maximumf %44, %45 : vector<8x128xf32>
    %c0_33 = arith.constant 0 : index
    %c0_34 = arith.constant 0 : index
    %47 = vector.load %arg5[%c0_33, %c0_34] : memref<8x128xf32, #tpu.memory_space<vmem>>, vector<8x128xf32>
    tpu.vector_store %arg5[%c0_33, %c0_34], %46 {strides = array<i32>} : memref<8x128xf32, #tpu.memory_space<vmem>>, vector<8x128xf32>,
    return
  }
  func.func @transform_0(%arg0: i32) -> (i32, i32) {
    %c0_i32 = arith.constant 0 : i32
    %c0_i32_0 = arith.constant 0 : i32
    return %arg0, %c0_i32 : i32, i32
  }
  func.func @transform_1(%arg0: i32) -> (i32, i32) {
    %c0_i32 = arith.constant 0 : i32
    %c0_i32_0 = arith.constant 0 : i32
    %c0_i32_1 = arith.constant 0 : i32
    return %c0_i32, %c0_i32_0 : i32, i32
  }
  func.func @transform_2(%arg0: i32) -> (i32, i32, i32) {
    %c0_i32 = arith.constant 0 : i32
    %c0_i32_0 = arith.constant 0 : i32
    %c0_i32_1 = arith.constant 0 : i32
    %c0_i32_2 = arith.constant 0 : i32
    return %c0_i32, %c0_i32_0, %c0_i32_1 : i32, i32, i32
  }
  func.func @transform_3(%arg0: i32) -> (i32, i32, i32) {
    %c0_i32 = arith.constant 0 : i32
    %c0_i32_0 = arith.constant 0 : i32
    %c0_i32_1 = arith.constant 0 : i32
    %c0_i32_2 = arith.constant 0 : i32
    return %c0_i32, %c0_i32_0, %c0_i32_1 : i32, i32, i32
  }
  func.func @transform_4(%arg0: i32) -> (i32, i32) {
    %c0_i32 = arith.constant 0 : i32
    %c0_i32_0 = arith.constant 0 : i32
    return %arg0, %c0_i32 : i32, i32
  }
}

</mosaic_0001>

<llo_original>
// kernel: tpu_custom_call.1
$region0: #{tpu_custom_call.1}
  #allocation0 [shape = 'u32[]', space=smem, size = 0x4, offset = 0x4, fixed_abs, tag = 'smem constant byte address 0x4 - core index']
  #allocation1 [shape = 'u32[144,128]{1,0:T(1,128)}', space=vmem, size = 0x12000, scoped, tag = 'internal scratch']
  %s0 = inlined_call_operand.hbm [shape: f32[8,128], index: 0, kind: input, shape index: {}]
  %s1 = inlined_call_operand.hbm [shape: f32[128,128], index: 1, kind: input, shape index: {}]
  %s2 = inlined_call_operand.hbm [shape: f32[4,128,128], index: 2, kind: input, shape index: {}]
  %s3 = inlined_call_operand.vmem [shape: f32[4,1,128], index: 3, kind: input, shape index: {}]
  %s4 = inlined_call_operand.hbm [shape: f32[8,128], index: 4, kind: output, shape index: {}]
  %s5 = sld [smem:[#allocation0]]
  $region38: #{tpu_custom_call.1} parent=0
    _
  %s7 = ssub.s32 1, %s5
  %s8 = scalar_select 0, %s7, %s5
  $region1: #{tpu_custom_call.1} parent=0
    #allocation2 [shape = 'u8[4096]{0}', space=vmem, size = 0x1000, scoped, tag = 'input window, operand 0, single buffered']
    #allocation3 [shape = 's32[1]{0}', space=sflag, size = 0x4, scoped, tag = 'scoped memory for tpu_custom_call.1']
    #allocation4 [shape = 's32[1]{0}', space=sflag, size = 0x4, scoped, tag = 'scoped memory for tpu_custom_call.1']
    #allocation5 [shape = 'u8[65536]{0}', space=vmem, size = 0x10000, scoped, tag = 'input window, operand 1, single buffered']
    #allocation6 [shape = 's32[1]{0}', space=sflag, size = 0x4, scoped, tag = 'scoped memory for tpu_custom_call.1']
    #allocation7 [shape = 'u8[262144]{0}', space=vmem, size = 0x40000, scoped, tag = 'input window, operand 2, single buffered']
    #allocation8 [shape = 'u8[4096]{0}', space=vmem, size = 0x1000, scoped, tag = 'output window, operand 0, single buffered']
    %9 = vsyncpa [#allocation3], 0
    %10 = vsyncpa [#allocation6], 0
    %11 = vsyncpa [#allocation4], 0
    // Predicated region
    $region2: #{tpu_custom_call.1} parent=1 // pred_check
      _
    $region3: #{tpu_custom_call.1} parent=1 // pred_check_branch
      %13 = sbr.rel (0) target = $region5
    $region4: #{tpu_custom_call.1} parent=1 // pred_region
      %s15 = ssub.s32 128, 128
      %16 = vsyncadd [#allocation3], %s15
      %s18 = sshll.u32 [#allocation2], 4
      %s19 = int_to_ptr.vmem [resolvable:$true] %s18
      %21 = dma.hbm_to_vmem [thread:$0]  %s0, 128, %s19, [#allocation3]
    $region5: #{tpu_custom_call.1} parent=1 // pred_fallthru
      _
    // Predicated region
    $region6: #{tpu_custom_call.1} parent=1 // pred_check
      _
    $region7: #{tpu_custom_call.1} parent=1 // pred_check_branch
      %23 = sbr.rel (0) target = $region9
    $region8: #{tpu_custom_call.1} parent=1 // pred_region
      %s25 = ssub.s32 2048, 2048
      %26 = vsyncadd [#allocation6], %s25
      %s27 = sshll.u32 [#allocation5], 4
      %s28 = int_to_ptr.vmem [resolvable:$true] %s27
      %33 = dma.hbm_to_vmem [thread:$0]  %s1, 2048, %s28, [#allocation6], 128, 128, 8
    $region9: #{tpu_custom_call.1} parent=1 // pred_fallthru
      _
    // Predicated region
    $region10: #{tpu_custom_call.1} parent=1 // pred_check
      _
    $region11: #{tpu_custom_call.1} parent=1 // pred_check_branch
      %35 = sbr.rel (0) target = $region13
    $region12: #{tpu_custom_call.1} parent=1 // pred_region
      %s37 = ssub.s32 8192, 8192
      %38 = vsyncadd [#allocation6], %s37
      %s39 = sshll.u32 [#allocation7], 4
      %s40 = int_to_ptr.vmem [resolvable:$true] %s39
      %45 = dma.hbm_to_vmem [thread:$0]  %s2, 8192, %s40, [#allocation6], 128, 128, 8
    $region13: #{tpu_custom_call.1} parent=1 // pred_fallthru
      _
    // Predicated region
    $region14: #{tpu_custom_call.1} parent=1 // pred_check
      _
    $region15: #{tpu_custom_call.1} parent=1 // pred_check_branch
      %47 = sbr.rel (0) target = $region17
    $region16: #{tpu_custom_call.1} parent=1 // pred_region
      _
    $region17: #{tpu_custom_call.1} parent=1 // pred_fallthru
      _
    // Predicated region
    $region18: #{tpu_custom_call.1} parent=1 // pred_check
      _
    $region19: #{tpu_custom_call.1} parent=1 // pred_check_branch
      %49 = sbr.rel (0) target = $region21
    $region20: #{tpu_custom_call.1} parent=1 // pred_region
      %50 = dma.done [#allocation3], 128
    $region21: #{tpu_custom_call.1} parent=1 // pred_fallthru
      _
    // Predicated region
    $region22: #{tpu_custom_call.1} parent=1 // pred_check
      _
    $region23: #{tpu_custom_call.1} parent=1 // pred_check_branch
      %52 = sbr.rel (0) target = $region25
    $region24: #{tpu_custom_call.1} parent=1 // pred_region
      %53 = dma.done [#allocation6], 2048
    $region25: #{tpu_custom_call.1} parent=1 // pred_fallthru
      _
    // Predicated region
    $region26: #{tpu_custom_call.1} parent=1 // pred_check
      _
    $region27: #{tpu_custom_call.1} parent=1 // pred_check_branch
      %55 = sbr.rel (0) target = $region29
    $region28: #{tpu_custom_call.1} parent=1 // pred_region
      %56 = dma.done [#allocation6], 8192
    $region29: #{tpu_custom_call.1} parent=1 // pred_fallthru
      _
    %v57 = vld [vmem:[#allocation2] sm:$0xff]
    %v58 = vmul.f32 %v57, %v57
    %v59 = vld [vmem:[#allocation5] sm:$0xff]
    %v60 = vld [vmem:[#allocation5 + $0x8] sm:$0xff]
    %v61 = vld [vmem:[#allocation5 + $0x10] sm:$0xff]
    %v62 = vld [vmem:[#allocation5 + $0x18] sm:$0xff]
    %v63 = vld [vmem:[#allocation5 + $0x20] sm:$0xff]
    %v64 = vld [vmem:[#allocation5 + $0x28] sm:$0xff]
    %v65 = vld [vmem:[#allocation5 + $0x30] sm:$0xff]
    %v66 = vld [vmem:[#allocation5 + $0x38] sm:$0xff]
    %v67 = vld [vmem:[#allocation5 + $0x40] sm:$0xff]
    %v68 = vld [vmem:[#allocation5 + $0x48] sm:$0xff]
    %v69 = vld [vmem:[#allocation5 + $0x50] sm:$0xff]
    %v70 = vld [vmem:[#allocation5 + $0x58] sm:$0xff]
    %v71 = vld [vmem:[#allocation5 + $0x60] sm:$0xff]
    %v72 = vld [vmem:[#allocation5 + $0x68] sm:$0xff]
    %v73 = vld [vmem:[#allocation5 + $0x70] sm:$0xff]
    %v74 = vld [vmem:[#allocation5 + $0x78] sm:$0xff]
    %75 = vmatprep.subr.mxu0 0.0
    %76 = vmatpush1.msra.mxu0 %v74
    %77 = vmatprep.subr.mxu0 0.0
    %78 = vmatpush1.msra.mxu0 %v73
    %79 = vmatprep.subr.mxu0 0.0
    %80 = vmatpush1.msra.mxu0 %v72
    %81 = vmatprep.subr.mxu0 0.0
    %82 = vmatpush1.msra.mxu0 %v71
    %83 = vmatprep.subr.mxu0 0.0
    %84 = vmatpush1.msra.mxu0 %v70
    %85 = vmatprep.subr.mxu0 0.0
    %86 = vmatpush1.msra.mxu0 %v69
    %87 = vmatprep.subr.mxu0 0.0
    %88 = vmatpush1.msra.mxu0 %v68
    %89 = vmatprep.subr.mxu0 0.0
    %90 = vmatpush1.msra.mxu0 %v67
    %91 = vmatprep.subr.mxu0 0.0
    %92 = vmatpush1.msra.mxu0 %v66
    %93 = vmatprep.subr.mxu0 0.0
    %94 = vmatpush1.msra.mxu0 %v65
    %95 = vmatprep.subr.mxu0 0.0
    %96 = vmatpush1.msra.mxu0 %v64
    %97 = vmatprep.subr.mxu0 0.0
    %98 = vmatpush1.msra.mxu0 %v63
    %99 = vmatprep.subr.mxu0 0.0
    %100 = vmatpush1.msra.mxu0 %v62
    %101 = vmatprep.subr.mxu0 0.0
    %102 = vmatpush1.msra.mxu0 %v61
    %103 = vmatprep.subr.mxu0 0.0
    %104 = vmatpush1.msra.mxu0 %v60
    %105 = vmatprep.subr.mxu0 0.0
    %106 = vmatpush1.msra.mxu0 %v59
    %107 = vmatprep.subr.mxu0 0.0
    %108 = vmatpush2.msra.mxu0 0.0
    %109 = vmatprep.subr.mxu0 0.0
    %110 = vmatpush2.msra.mxu0 0.0
    %111 = vmatprep.subr.mxu0 0.0
    %112 = vmatpush2.msra.mxu0 0.0
    %113 = vmatprep.subr.mxu0 0.0
    %114 = vmatpush2.msra.mxu0 0.0
    %115 = vmatprep.subr.mxu0 0.0
    %116 = vmatpush2.msra.mxu0 0.0
    %117 = vmatprep.subr.mxu0 0.0
    %118 = vmatpush2.msra.mxu0 0.0
    %119 = vmatprep.subr.mxu0 0.0
    %120 = vmatpush2.msra.mxu0 0.0
    %121 = vmatprep.subr.mxu0 0.0
    %122 = vmatpush2.msra.mxu0 0.0
    %123 = vmatprep.subr.mxu0 0.0
    %124 = vmatpush2.msra.mxu0 0.0
    %125 = vmatprep.subr.mxu0 0.0
    %126 = vmatpush2.msra.mxu0 0.0
    %127 = vmatprep.subr.mxu0 0.0
    %128 = vmatpush2.msra.mxu0 0.0
    %129 = vmatprep.subr.mxu0 0.0
    %130 = vmatpush2.msra.mxu0 0.0
    %131 = vmatprep.subr.mxu0 0.0
    %132 = vmatpush2.msra.mxu0 0.0
    %133 = vmatprep.subr.mxu0 0.0
    %134 = vmatpush2.msra.mxu0 0.0
    %135 = vmatprep.subr.mxu0 0.0
    %136 = vmatpush2.msra.mxu0 0.0
    %137 = vmatprep.subr.mxu0 0.0
    %138 = vmatpush2.msra.mxu0 0.0
    %139 = vmatprep.mubr.f32.mxu0 0.0
    %140 = vmatmul.mubr.f32.gmra.mxu0 %v58
    %v141 = vpop.f32.mrf.mxu0
    %v142 = vadd.f32 0.0, %v141
    %v143 = vpop.f32.mrf.mxu0
    %144 = vdwg.mxu0
    %v145 = vmax.f32 %v142, 1e-24
    %v146 = vrsqrt.pop %v145
    %v147 = vmul.f32 %v57, %v146
    %v148 = vld [vmem:[#allocation7] sm:$0xff]
    %v149 = vld [vmem:[#allocation7 + $0x8] sm:$0xff]
    %v150 = vld [vmem:[#allocation7 + $0x10] sm:$0xff]
    %v151 = vld [vmem:[#allocation7 + $0x18] sm:$0xff]
    %v152 = vld [vmem:[#allocation7 + $0x20] sm:$0xff]
    %v153 = vld [vmem:[#allocation7 + $0x28] sm:$0xff]
    %v154 = vld [vmem:[#allocation7 + $0x30] sm:$0xff]
    %v155 = vld [vmem:[#allocation7 + $0x38] sm:$0xff]
    %v156 = vld [vmem:[#allocation7 + $0x40] sm:$0xff]
    %v157 = vld [vmem:[#allocation7 + $0x48] sm:$0xff]
    %v158 = vld [vmem:[#allocation7 + $0x50] sm:$0xff]
    %v159 = vld [vmem:[#allocation7 + $0x58] sm:$0xff]
    %v160 = vld [vmem:[#allocation7 + $0x60] sm:$0xff]
    %v161 = vld [vmem:[#allocation7 + $0x68] sm:$0xff]
    %v162 = vld [vmem:[#allocation7 + $0x70] sm:$0xff]
    %v163 = vld [vmem:[#allocation7 + $0x78] sm:$0xff]
    %v164 = vld [vmem:[%s3] sm:$0x1]
    %v166 = vlaneseq
    %v167 = vshrl.u32 %v166, 7
    %v168 = vsub.s32 0, %v167
    %v169 = vrot.slane %v164, %v168
    %171 = vmatprep.subr.mxu0 0.0
    %172 = vmatpush1.msra.mxu0 %v163
    %173 = vmatprep.subr.mxu0 0.0
    %174 = vmatpush1.msra.mxu0 %v162
    %175 = vmatprep.subr.mxu0 0.0
    %176 = vmatpush1.msra.mxu0 %v161
    %177 = vmatprep.subr.mxu0 0.0
    %178 = vmatpush1.msra.mxu0 %v160
    %179 = vmatprep.subr.mxu0 0.0
    %180 = vmatpush1.msra.mxu0 %v159
    %181 = vmatprep.subr.mxu0 0.0
    %182 = vmatpush1.msra.mxu0 %v158
    %183 = vmatprep.subr.mxu0 0.0
    %184 = vmatpush1.msra.mxu0 %v157
    %185 = vmatprep.subr.mxu0 0.0
    %186 = vmatpush1.msra.mxu0 %v156
    %187 = vmatprep.subr.mxu0 0.0
    %188 = vmatpush1.msra.mxu0 %v155
    %189 = vmatprep.subr.mxu0 0.0
    %190 = vmatpush1.msra.mxu0 %v154
    %191 = vmatprep.subr.mxu0 0.0
    %192 = vmatpush1.msra.mxu0 %v153
    %193 = vmatprep.subr.mxu0 0.0
    %194 = vmatpush1.msra.mxu0 %v152
    %195 = vmatprep.subr.mxu0 0.0
    %196 = vmatpush1.msra.mxu0 %v151
    %197 = vmatprep.subr.mxu0 0.0
    %198 = vmatpush1.msra.mxu0 %v150
    %199 = vmatprep.subr.mxu0 0.0
    %200 = vmatpush1.msra.mxu0 %v149
    %201 = vmatprep.subr.mxu0 0.0
    %202 = vmatpush1.msra.mxu0 %v148
    %203 = vmatprep.subr.mxu0 0.0
    %204 = vmatpush2.msra.mxu0 0.0
    %205 = vmatprep.subr.mxu0 0.0
    %206 = vmatpush2.msra.mxu0 0.0
    %207 = vmatprep.subr.mxu0 0.0
    %208 = vmatpush2.msra.mxu0 0.0
    %209 = vmatprep.subr.mxu0 0.0
    %210 = vmatpush2.msra.mxu0 0.0
    %211 = vmatprep.subr.mxu0 0.0
    %212 = vmatpush2.msra.mxu0 0.0
    %213 = vmatprep.subr.mxu0 0.0
    %214 = vmatpush2.msra.mxu0 0.0
    %215 = vmatprep.subr.mxu0 0.0
    %216 = vmatpush2.msra.mxu0 0.0
    %217 = vmatprep.subr.mxu0 0.0
    %218 = vmatpush2.msra.mxu0 0.0
    %219 = vmatprep.subr.mxu0 0.0
    %220 = vmatpush2.msra.mxu0 0.0
    %221 = vmatprep.subr.mxu0 0.0
    %222 = vmatpush2.msra.mxu0 0.0
    %223 = vmatprep.subr.mxu0 0.0
    %224 = vmatpush2.msra.mxu0 0.0
    %225 = vmatprep.subr.mxu0 0.0
    %226 = vmatpush2.msra.mxu0 0.0
    %227 = vmatprep.subr.mxu0 0.0
    %228 = vmatpush2.msra.mxu0 0.0
    %229 = vmatprep.subr.mxu0 0.0
    %230 = vmatpush2.msra.mxu0 0.0
    %231 = vmatprep.subr.mxu0 0.0
    %232 = vmatpush2.msra.mxu0 0.0
    %233 = vmatprep.subr.mxu0 0.0
    %234 = vmatpush2.msra.mxu0 0.0
    %235 = vmatprep.mubr.f32.mxu0 0.0
    %236 = vmatmul.mubr.f32.gmra.mxu0 %v147
    %v237 = vpop.f32.mrf.mxu0
    %v238 = vadd.f32 %v169, %v237
    %v239 = vpop.f32.mrf.mxu0
    %240 = vdwg.mxu0
    %v241 = vmul.f32 %v238, 0.2
    %v242 = vmax.f32 %v238, %v241
    %s243 = scalar_lea.vmem [#allocation7], 128
    %v244 = vld [vmem:[%s243] sm:$0xff]
    %v245 = vld [vmem:[%s243 + $0x8] sm:$0xff]
    %v246 = vld [vmem:[%s243 + $0x10] sm:$0xff]
    %v247 = vld [vmem:[%s243 + $0x18] sm:$0xff]
    %v248 = vld [vmem:[%s243 + $0x20] sm:$0xff]
    %v249 = vld [vmem:[%s243 + $0x28] sm:$0xff]
    %v250 = vld [vmem:[%s243 + $0x30] sm:$0xff]
    %v251 = vld [vmem:[%s243 + $0x38] sm:$0xff]
    %v252 = vld [vmem:[%s243 + $0x40] sm:$0xff]
    %v253 = vld [vmem:[%s243 + $0x48] sm:$0xff]
    %v254 = vld [vmem:[%s243 + $0x50] sm:$0xff]
    %v255 = vld [vmem:[%s243 + $0x58] sm:$0xff]
    %v256 = vld [vmem:[%s243 + $0x60] sm:$0xff]
    %v257 = vld [vmem:[%s243 + $0x68] sm:$0xff]
    %v258 = vld [vmem:[%s243 + $0x70] sm:$0xff]
    %v259 = vld [vmem:[%s243 + $0x78] sm:$0xff]
    %s260 = scalar_lea.vmem %s3, 1
    %v261 = vld [vmem:[%s260] sm:$0x1]
    %v263 = vlaneseq
    %v264 = vshrl.u32 %v263, 7
    %v265 = vsub.s32 0, %v264
    %v266 = vrot.slane %v261, %v265
    %268 = vmatprep.subr.mxu0 0.0
    %269 = vmatpush1.msra.mxu0 %v259
    %270 = vmatprep.subr.mxu0 0.0
    %271 = vmatpush1.msra.mxu0 %v258
    %272 = vmatprep.subr.mxu0 0.0
    %273 = vmatpush1.msra.mxu0 %v257
    %274 = vmatprep.subr.mxu0 0.0
    %275 = vmatpush1.msra.mxu0 %v256
    %276 = vmatprep.subr.mxu0 0.0
    %277 = vmatpush1.msra.mxu0 %v255
    %278 = vmatprep.subr.mxu0 0.0
    %279 = vmatpush1.msra.mxu0 %v254
    %280 = vmatprep.subr.mxu0 0.0
    %281 = vmatpush1.msra.mxu0 %v253
    %282 = vmatprep.subr.mxu0 0.0
    %283 = vmatpush1.msra.mxu0 %v252
    %284 = vmatprep.subr.mxu0 0.0
    %285 = vmatpush1.msra.mxu0 %v251
    %286 = vmatprep.subr.mxu0 0.0
    %287 = vmatpush1.msra.mxu0 %v250
    %288 = vmatprep.subr.mxu0 0.0
    %289 = vmatpush1.msra.mxu0 %v249
    %290 = vmatprep.subr.mxu0 0.0
    %291 = vmatpush1.msra.mxu0 %v248
    %292 = vmatprep.subr.mxu0 0.0
    %293 = vmatpush1.msra.mxu0 %v247
    %294 = vmatprep.subr.mxu0 0.0
    %295 = vmatpush1.msra.mxu0 %v246
    %296 = vmatprep.subr.mxu0 0.0
    %297 = vmatpush1.msra.mxu0 %v245
    %298 = vmatprep.subr.mxu0 0.0
    %299 = vmatpush1.msra.mxu0 %v244
    %300 = vmatprep.subr.mxu0 0.0
    %301 = vmatpush2.msra.mxu0 0.0
    %302 = vmatprep.subr.mxu0 0.0
    %303 = vmatpush2.msra.mxu0 0.0
    %304 = vmatprep.subr.mxu0 0.0
    %305 = vmatpush2.msra.mxu0 0.0
    %306 = vmatprep.subr.mxu0 0.0
    %307 = vmatpush2.msra.mxu0 0.0
    %308 = vmatprep.subr.mxu0 0.0
    %309 = vmatpush2.msra.mxu0 0.0
    %310 = vmatprep.subr.mxu0 0.0
    %311 = vmatpush2.msra.mxu0 0.0
    %312 = vmatprep.subr.mxu0 0.0
    %313 = vmatpush2.msra.mxu0 0.0
    %314 = vmatprep.subr.mxu0 0.0
    %315 = vmatpush2.msra.mxu0 0.0
    %316 = vmatprep.subr.mxu0 0.0
    %317 = vmatpush2.msra.mxu0 0.0
    %318 = vmatprep.subr.mxu0 0.0
    %319 = vmatpush2.msra.mxu0 0.0
    %320 = vmatprep.subr.mxu0 0.0
    %321 = vmatpush2.msra.mxu0 0.0
    %322 = vmatprep.subr.mxu0 0.0
    %323 = vmatpush2.msra.mxu0 0.0
    %324 = vmatprep.subr.mxu0 0.0
    %325 = vmatpush2.msra.mxu0 0.0
    %326 = vmatprep.subr.mxu0 0.0
    %327 = vmatpush2.msra.mxu0 0.0
    %328 = vmatprep.subr.mxu0 0.0
    %329 = vmatpush2.msra.mxu0 0.0
    %330 = vmatprep.subr.mxu0 0.0
    %331 = vmatpush2.msra.mxu0 0.0
    %332 = vmatprep.mubr.f32.mxu0 0.0
    %333 = vmatmul.mubr.f32.gmra.mxu0 %v242
    %v334 = vpop.f32.mrf.mxu0
    %v335 = vadd.f32 %v266, %v334
    %v336 = vpop.f32.mrf.mxu0
    %337 = vdwg.mxu0
    %v338 = vmul.f32 %v335, 0.2
    %v339 = vmax.f32 %v335, %v338
    %s340 = scalar_lea.vmem [#allocation7], 256
    %v341 = vld [vmem:[%s340] sm:$0xff]
    %v342 = vld [vmem:[%s340 + $0x8] sm:$0xff]
    %v343 = vld [vmem:[%s340 + $0x10] sm:$0xff]
    %v344 = vld [vmem:[%s340 + $0x18] sm:$0xff]
    %v345 = vld [vmem:[%s340 + $0x20] sm:$0xff]
    %v346 = vld [vmem:[%s340 + $0x28] sm:$0xff]
    %v347 = vld [vmem:[%s340 + $0x30] sm:$0xff]
    %v348 = vld [vmem:[%s340 + $0x38] sm:$0xff]
    %v349 = vld [vmem:[%s340 + $0x40] sm:$0xff]
    %v350 = vld [vmem:[%s340 + $0x48] sm:$0xff]
    %v351 = vld [vmem:[%s340 + $0x50] sm:$0xff]
    %v352 = vld [vmem:[%s340 + $0x58] sm:$0xff]
    %v353 = vld [vmem:[%s340 + $0x60] sm:$0xff]
    %v354 = vld [vmem:[%s340 + $0x68] sm:$0xff]
    %v355 = vld [vmem:[%s340 + $0x70] sm:$0xff]
    %v356 = vld [vmem:[%s340 + $0x78] sm:$0xff]
    %s357 = scalar_lea.vmem %s3, 2
    %v358 = vld [vmem:[%s357] sm:$0x1]
    %v360 = vlaneseq
    %v361 = vshrl.u32 %v360, 7
    %v362 = vsub.s32 0, %v361
    %v363 = vrot.slane %v358, %v362
    %365 = vmatprep.subr.mxu0 0.0
    %366 = vmatpush1.msra.mxu0 %v356
    %367 = vmatprep.subr.mxu0 0.0
    %368 = vmatpush1.msra.mxu0 %v355
    %369 = vmatprep.subr.mxu0 0.0
    %370 = vmatpush1.msra.mxu0 %v354
    %371 = vmatprep.subr.mxu0 0.0
    %372 = vmatpush1.msra.mxu0 %v353
    %373 = vmatprep.subr.mxu0 0.0
    %374 = vmatpush1.msra.mxu0 %v352
    %375 = vmatprep.subr.mxu0 0.0
    %376 = vmatpush1.msra.mxu0 %v351
    %377 = vmatprep.subr.mxu0 0.0
    %378 = vmatpush1.msra.mxu0 %v350
    %379 = vmatprep.subr.mxu0 0.0
    %380 = vmatpush1.msra.mxu0 %v349
    %381 = vmatprep.subr.mxu0 0.0
    %382 = vmatpush1.msra.mxu0 %v348
    %383 = vmatprep.subr.mxu0 0.0
    %384 = vmatpush1.msra.mxu0 %v347
    %385 = vmatprep.subr.mxu0 0.0
    %386 = vmatpush1.msra.mxu0 %v346
    %387 = vmatprep.subr.mxu0 0.0
    %388 = vmatpush1.msra.mxu0 %v345
    %389 = vmatprep.subr.mxu0 0.0
    %390 = vmatpush1.msra.mxu0 %v344
    %391 = vmatprep.subr.mxu0 0.0
    %392 = vmatpush1.msra.mxu0 %v343
    %393 = vmatprep.subr.mxu0 0.0
    %394 = vmatpush1.msra.mxu0 %v342
    %395 = vmatprep.subr.mxu0 0.0
    %396 = vmatpush1.msra.mxu0 %v341
    %397 = vmatprep.subr.mxu0 0.0
    %398 = vmatpush2.msra.mxu0 0.0
    %399 = vmatprep.subr.mxu0 0.0
    %400 = vmatpush2.msra.mxu0 0.0
    %401 = vmatprep.subr.mxu0 0.0
    %402 = vmatpush2.msra.mxu0 0.0
    %403 = vmatprep.subr.mxu0 0.0
    %404 = vmatpush2.msra.mxu0 0.0
    %405 = vmatprep.subr.mxu0 0.0
    %406 = vmatpush2.msra.mxu0 0.0
    %407 = vmatprep.subr.mxu0 0.0
    %408 = vmatpush2.msra.mxu0 0.0
    %409 = vmatprep.subr.mxu0 0.0
    %410 = vmatpush2.msra.mxu0 0.0
    %411 = vmatprep.subr.mxu0 0.0
    %412 = vmatpush2.msra.mxu0 0.0
    %413 = vmatprep.subr.mxu0 0.0
    %414 = vmatpush2.msra.mxu0 0.0
    %415 = vmatprep.subr.mxu0 0.0
    %416 = vmatpush2.msra.mxu0 0.0
    %417 = vmatprep.subr.mxu0 0.0
    %418 = vmatpush2.msra.mxu0 0.0
    %419 = vmatprep.subr.mxu0 0.0
    %420 = vmatpush2.msra.mxu0 0.0
    %421 = vmatprep.subr.mxu0 0.0
    %422 = vmatpush2.msra.mxu0 0.0
    %423 = vmatprep.subr.mxu0 0.0
    %424 = vmatpush2.msra.mxu0 0.0
    %425 = vmatprep.subr.mxu0 0.0
    %426 = vmatpush2.msra.mxu0 0.0
    %427 = vmatprep.subr.mxu0 0.0
    %428 = vmatpush2.msra.mxu0 0.0
    %429 = vmatprep.mubr.f32.mxu0 0.0
    %430 = vmatmul.mubr.f32.gmra.mxu0 %v339
    %v431 = vpop.f32.mrf.mxu0
    %v432 = vadd.f32 %v363, %v431
    %v433 = vpop.f32.mrf.mxu0
    %434 = vdwg.mxu0
    %v435 = vmul.f32 %v432, 0.2
    %v436 = vmax.f32 %v432, %v435
    %s437 = scalar_lea.vmem [#allocation7], 384
    %v438 = vld [vmem:[%s437] sm:$0xff]
    %v439 = vld [vmem:[%s437 + $0x8] sm:$0xff]
    %v440 = vld [vmem:[%s437 + $0x10] sm:$0xff]
    %v441 = vld [vmem:[%s437 + $0x18] sm:$0xff]
    %v442 = vld [vmem:[%s437 + $0x20] sm:$0xff]
    %v443 = vld [vmem:[%s437 + $0x28] sm:$0xff]
    %v444 = vld [vmem:[%s437 + $0x30] sm:$0xff]
    %v445 = vld [vmem:[%s437 + $0x38] sm:$0xff]
    %v446 = vld [vmem:[%s437 + $0x40] sm:$0xff]
    %v447 = vld [vmem:[%s437 + $0x48] sm:$0xff]
    %v448 = vld [vmem:[%s437 + $0x50] sm:$0xff]
    %v449 = vld [vmem:[%s437 + $0x58] sm:$0xff]
    %v450 = vld [vmem:[%s437 + $0x60] sm:$0xff]
    %v451 = vld [vmem:[%s437 + $0x68] sm:$0xff]
    %v452 = vld [vmem:[%s437 + $0x70] sm:$0xff]
    %v453 = vld [vmem:[%s437 + $0x78] sm:$0xff]
    %s454 = scalar_lea.vmem %s3, 3
    %v455 = vld [vmem:[%s454] sm:$0x1]
    %v457 = vlaneseq
    %v458 = vshrl.u32 %v457, 7
    %v459 = vsub.s32 0, %v458
    %v460 = vrot.slane %v455, %v459
    %462 = vmatprep.subr.mxu0 0.0
    %463 = vmatpush1.msra.mxu0 %v453
    %464 = vmatprep.subr.mxu0 0.0
    %465 = vmatpush1.msra.mxu0 %v452
    %466 = vmatprep.subr.mxu0 0.0
    %467 = vmatpush1.msra.mxu0 %v451
    %468 = vmatprep.subr.mxu0 0.0
    %469 = vmatpush1.msra.mxu0 %v450
    %470 = vmatprep.subr.mxu0 0.0
    %471 = vmatpush1.msra.mxu0 %v449
    %472 = vmatprep.subr.mxu0 0.0
    %473 = vmatpush1.msra.mxu0 %v448
    %474 = vmatprep.subr.mxu0 0.0
    %475 = vmatpush1.msra.mxu0 %v447
    %476 = vmatprep.subr.mxu0 0.0
    %477 = vmatpush1.msra.mxu0 %v446
    %478 = vmatprep.subr.mxu0 0.0
    %479 = vmatpush1.msra.mxu0 %v445
    %480 = vmatprep.subr.mxu0 0.0
    %481 = vmatpush1.msra.mxu0 %v444
    %482 = vmatprep.subr.mxu0 0.0
    %483 = vmatpush1.msra.mxu0 %v443
    %484 = vmatprep.subr.mxu0 0.0
    %485 = vmatpush1.msra.mxu0 %v442
    %486 = vmatprep.subr.mxu0 0.0
    %487 = vmatpush1.msra.mxu0 %v441
    %488 = vmatprep.subr.mxu0 0.0
    %489 = vmatpush1.msra.mxu0 %v440
    %490 = vmatprep.subr.mxu0 0.0
    %491 = vmatpush1.msra.mxu0 %v439
    %492 = vmatprep.subr.mxu0 0.0
    %493 = vmatpush1.msra.mxu0 %v438
    %494 = vmatprep.subr.mxu0 0.0
    %495 = vmatpush2.msra.mxu0 0.0
    %496 = vmatprep.subr.mxu0 0.0
    %497 = vmatpush2.msra.mxu0 0.0
    %498 = vmatprep.subr.mxu0 0.0
    %499 = vmatpush2.msra.mxu0 0.0
    %500 = vmatprep.subr.mxu0 0.0
    %501 = vmatpush2.msra.mxu0 0.0
    %502 = vmatprep.subr.mxu0 0.0
    %503 = vmatpush2.msra.mxu0 0.0
    %504 = vmatprep.subr.mxu0 0.0
    %505 = vmatpush2.msra.mxu0 0.0
    %506 = vmatprep.subr.mxu0 0.0
    %507 = vmatpush2.msra.mxu0 0.0
    %508 = vmatprep.subr.mxu0 0.0
    %509 = vmatpush2.msra.mxu0 0.0
    %510 = vmatprep.subr.mxu0 0.0
    %511 = vmatpush2.msra.mxu0 0.0
    %512 = vmatprep.subr.mxu0 0.0
    %513 = vmatpush2.msra.mxu0 0.0
    %514 = vmatprep.subr.mxu0 0.0
    %515 = vmatpush2.msra.mxu0 0.0
    %516 = vmatprep.subr.mxu0 0.0
    %517 = vmatpush2.msra.mxu0 0.0
    %518 = vmatprep.subr.mxu0 0.0
    %519 = vmatpush2.msra.mxu0 0.0
    %520 = vmatprep.subr.mxu0 0.0
    %521 = vmatpush2.msra.mxu0 0.0
    %522 = vmatprep.subr.mxu0 0.0
    %523 = vmatpush2.msra.mxu0 0.0
    %524 = vmatprep.subr.mxu0 0.0
    %525 = vmatpush2.msra.mxu0 0.0
    %526 = vmatprep.mubr.f32.mxu0 0.0
    %527 = vmatmul.mubr.f32.gmra.mxu0 %v436
    %v528 = vpop.f32.mrf.mxu0
    %v529 = vadd.f32 %v460, %v528
    %v530 = vpop.f32.mrf.mxu0
    %531 = vdwg.mxu0
    %v532 = vmax.f32 %v529, 0.0
    %533 = vst [vmem:[#allocation8] sm:$0xff] %v532
    // Predicated region
    $region30: #{tpu_custom_call.1} parent=1 // pred_check
      _
    $region31: #{tpu_custom_call.1} parent=1 // pred_check_branch
      %535 = sbr.rel (0) target = $region33
    $region32: #{tpu_custom_call.1} parent=1 // pred_region
      %s537 = ssub.s32 128, 128
      %538 = vsyncadd [#allocation4], %s537
      %s540 = sshll.u32 [#allocation8], 4
      %s541 = int_to_ptr.vmem [resolvable:$true] %s540
      %543 = dma.vmem_to_hbm [thread:$0]  %s541, 128, %s4, [#allocation4]
    $region33: #{tpu_custom_call.1} parent=1 // pred_fallthru
      _
    // Predicated region
    $region34: #{tpu_custom_call.1} parent=1 // pred_check
      _
    $region35: #{tpu_custom_call.1} parent=1 // pred_check_branch
      %545 = sbr.rel (0) target = $region37
    $region36: #{tpu_custom_call.1} parent=1 // pred_region
      %546 = dma.done [#allocation4], 128
    $region37: #{tpu_custom_call.1} parent=1 // pred_fallthru
      _
    %547 = vsyncpa [#allocation3], 1
    %548 = vsyncpa [#allocation6], 1
    %549 = vsyncpa [#allocation4], 1

</llo_original>
